<compile_context>
chip_gen: v7x
topology: tpu7x:2x2x1
jax: 0.10.0
libtpu: 0.0.40
codegen_flags: <defaults>
</compile_context>

<pallas_src>
import functools

import numpy as np
import jax
import jax.numpy as jnp
from jax import lax
from jax.experimental import pallas as pl
from jax.experimental.pallas import tpu as pltpu

QMIN, QMAX = 0.0, 255.0          # quint8 (default QuantStub dtype after convert)


def _border_masks(cin_p, hgt, wdt):
    """(9*cin_p, H*W) float32 multiplicative masks implementing 'same' padding."""
    hw = hgt * wdt
    hh, ww = np.divmod(np.arange(hw), wdt)
    rows = []
    for kh in range(3):
        for kw in range(3):
            oh, ow = kh - 1, kw - 1
            ok = ((hh + oh >= 0) & (hh + oh < hgt)
                  & (ww + ow >= 0) & (ww + ow < wdt)).astype(np.float32)
            rows.append(np.broadcast_to(ok, (cin_p, hw)))
    return np.concatenate(rows, axis=0).astype(np.float32)


def _make_kernel(n, cin_p, hgt, wdt, roll_sign):
    hw = hgt * wdt

    def kernel(x_ref, w_ref, m_ref, b_ref, o_ref):
        i = pl.program_id(0)

        # ---- QuantStub observer (per-tensor MinMaxObserver), fused in-kernel.
        x_all = x_ref[...]                                 # (N, Cin_p, HW), resident
        amin = jnp.minimum(jnp.min(jnp.min(x_all, axis=0)), 0.0)
        amax = jnp.maximum(jnp.max(jnp.max(x_all, axis=0)), 0.0)
        scale = jnp.maximum((amax - amin) * (1.0 / (QMAX - QMIN)), 1e-8)
        inv_scale = 1.0 / scale
        zp = jnp.clip(jnp.round(QMIN - amin * inv_scale), QMIN, QMAX)

        # ---- fake-quant (quantize -> dequantize) of this image, in registers.
        x = x_ref[i]                                       # (Cin_p, HW)
        q = jnp.clip(jnp.round(x * inv_scale + zp), QMIN, QMAX)
        xq = (q - zp) * scale

        # ---- 9 lane-rolled copies stacked along sublanes (tile-aligned pieces),
        #      one multiplicative border mask, ONE fused MXU dot (K = 9*Cin_p).
        pieces = []
        for kh in range(3):
            for kw in range(3):
                d = (kh - 1) * wdt + (kw - 1)              # flat lane offset of tap
                sh = (-d * roll_sign) % hw
                pieces.append(xq if sh == 0 else pltpu.roll(xq, shift=sh, axis=1))
        x_stacked = jnp.concatenate(pieces, axis=0) * m_ref[...]   # (9*Cin_p, HW)

        y = jnp.dot(w_ref[...], x_stacked, preferred_element_type=jnp.float32)
        # bias + ReLU; DeQuantStub on a float output is the identity.
        o_ref[0] = jnp.maximum(y + b_ref[...], 0.0)

    return kernel


def ptq_wrapper_forward(x, params, *, roll_sign=1):
    n, cin, hgt, wdt = x.shape
    hw = hgt * wdt
    w = params["w"]                                    # (Cout, Cin, 3, 3), OIHW
    b = params["b"]                                    # (Cout,)
    cout = w.shape[0]
    cin_p = ((cin + 7) // 8) * 8                       # pad channels to the sublane tile

    if cin_p != cin:
        x = jnp.pad(x, ((0, 0), (0, cin_p - cin), (0, 0), (0, 0)))
        w = jnp.pad(w, ((0, 0), (0, cin_p - cin), (0, 0), (0, 0)))
    x_flat = x.reshape(n, cin_p, hw)                   # free reshape, NCHW kept
    # (Cout, 9*Cin_p): column index = (kh*3+kw)*Cin_p + c, matching the stacking order.
    w_all = jnp.transpose(w, (0, 2, 3, 1)).reshape(cout, 9 * cin_p).astype(jnp.float32)
    b_col = b.reshape(cout, 1).astype(jnp.float32)
    masks = jnp.asarray(_border_masks(cin_p, hgt, wdt))

    kernel = _make_kernel(n, cin_p, hgt, wdt, roll_sign)
    out = pl.pallas_call(
        kernel,
        out_shape=jax.ShapeDtypeStruct((n, cout, hw), jnp.float32),
        grid=(n,),
        in_specs=[
            pl.BlockSpec((n, cin_p, hw), lambda i: (0, 0, 0)),   # whole batch, resident
            pl.BlockSpec((cout, 9 * cin_p), lambda i: (0, 0)),   # fused weight tile
            pl.BlockSpec((9 * cin_p, hw), lambda i: (0, 0)),     # border masks, resident
            pl.BlockSpec((cout, 1), lambda i: (0, 0)),           # bias
        ],
        out_specs=pl.BlockSpec((1, cout, hw), lambda i: (i, 0, 0)),
        compiler_params=pltpu.CompilerParams(
            dimension_semantics=("parallel",),     # >= 2 steps -> both v7x TCs busy
            vmem_limit_bytes=32 * 1024 * 1024,     # within v7x's 32 MiB scoped default
        ),
    )(x_flat, w_all, masks, b_col)

    return out.reshape(n, cout, hgt, wdt)              # NCHW, free reshape


def _reference_forward(x, params):
    """Pure-JAX reference (same fake-quant + conv + bias + ReLU semantics)."""
    amin = jnp.minimum(jnp.min(x), 0.0)
    amax = jnp.maximum(jnp.max(x), 0.0)
    scale = jnp.maximum((amax - amin) / (QMAX - QMIN), 1e-8)
    inv_scale = 1.0 / scale
    zp = jnp.clip(jnp.round(QMIN - amin * inv_scale), QMIN, QMAX)
    q = jnp.clip(jnp.round(x * inv_scale + zp), QMIN, QMAX)
    xq = (q - zp) * scale
    y = lax.conv_general_dilated(
        xq, params["w"], window_strides=(1, 1), padding=((1, 1), (1, 1)),
        dimension_numbers=("NCHW", "OIHW", "NCHW"),
        precision=lax.Precision.HIGHEST)
    return jnp.maximum(y + params["b"].reshape(1, -1, 1, 1), 0.0)


def init_params(key, cin=4, cout=8):
    kw_, kb = jax.random.split(key)
    fan_in = cin * 9
    w = jax.random.normal(kw_, (cout, cin, 3, 3), jnp.float32) / jnp.sqrt(fan_in)
    b = 0.01 * jax.random.normal(kb, (cout,), jnp.float32)
    return {"w": w, "b": b}


if __name__ == "__main__":
    key = jax.random.PRNGKey(0)
    kx, kp = jax.random.split(key)
    x = jax.random.normal(kx, (2, 4, 16, 16), jnp.float32)          # NCHW
    params = init_params(kp, cin=4, cout=8)

    y_ref = _reference_forward(x, params)

    # pltpu.roll is pinned to the np.roll convention (roll_sign=+1); the
    # reference comparison below is the guard.  The -1 retry only compiles if
    # the pinned convention ever differs (not on the expected path).
    y = None
    for sign in (1, -1):
        fwd = jax.jit(functools.partial(ptq_wrapper_forward, roll_sign=sign))
        cand = fwd(x, params)
        jax.block_until_ready(cand)
        if bool(jnp.allclose(cand, y_ref, rtol=2e-2, atol=2e-2)):
            y = cand
            break
    assert y is not None, "Pallas output does not match pure-JAX reference"
    assert y.shape == (2, 8, 16, 16) and y.dtype == jnp.float32
    print("KERNEL_OK")
</pallas_src>

<mosaic_0001>
module attributes {stable_mosaic.version = 11 : i64} {
  func.func @kernel(%arg0: i32, %arg1: memref<2x8x256xf32, #tpu.memory_space<vmem>>, %arg2: memref<8x72xf32, #tpu.memory_space<vmem>>, %arg3: memref<72x256xf32, #tpu.memory_space<vmem>>, %arg4: memref<8x1xf32, #tpu.memory_space<vmem>>, %arg5: memref<1x8x256xf32, #tpu.memory_space<vmem>>) attributes {dimension_semantics = [#tpu.dimension_semantics<parallel>], iteration_bounds = array<i64: 2>, scalar_prefetch = 0 : i64, scratch_operands = 0 : i64, tpu.core_type = #tpu.core_type<tc>, window_params = [{pipeline_mode = #tpu.pipeline_mode<synchronous>, transform_indices = @transform_0, window_bounds = array<i64: 2, 8, 256>}, {pipeline_mode = #tpu.pipeline_mode<synchronous>, transform_indices = @transform_1, window_bounds = array<i64: 8, 72>}, {pipeline_mode = #tpu.pipeline_mode<synchronous>, transform_indices = @transform_2, window_bounds = array<i64: 72, 256>}, {pipeline_mode = #tpu.pipeline_mode<synchronous>, transform_indices = @transform_3, window_bounds = array<i64: 8, 1>}, {transform_indices = @transform_4, window_bounds = array<i64: 1, 8, 256>}]} {
    %c0 = arith.constant 0 : index
    %c0_0 = arith.constant 0 : index
    %c0_1 = arith.constant 0 : index
    %0 = vector.load %arg1[%c0, %c0_0, %c0_1] : memref<2x8x256xf32, #tpu.memory_space<vmem>>, vector<2x8x256xf32>
    %cst = arith.constant dense<0x7F800000> : vector<8x256xf32>
    %1 = vector.multi_reduction <minimumf>, %0, %cst [0] : vector<2x8x256xf32> to vector<8x256xf32>
    %2 = vector.shape_cast %1 : vector<8x256xf32> to vector<1x8x256xf32>
    %cst_2 = arith.constant dense<0x7F800000> : vector<1xf32>
    %3 = vector.multi_reduction <minimumf>, %2, %cst_2 [1, 2] : vector<1x8x256xf32> to vector<1xf32>
    %4 = vector.shape_cast %3 : vector<1xf32> to vector<1x1x1xf32>
    %5 = vector.extract %4[0, 0, 0] : f32 from vector<1x1x1xf32>
    %cst_3 = arith.constant 0.000000e+00 : f32
    %6 = arith.minimumf %5, %cst_3 : f32
    %cst_4 = arith.constant dense<0xFF800000> : vector<8x256xf32>
    %7 = vector.multi_reduction <maximumf>, %0, %cst_4 [0] : vector<2x8x256xf32> to vector<8x256xf32>
    %8 = vector.shape_cast %7 : vector<8x256xf32> to vector<1x8x256xf32>
    %cst_5 = arith.constant dense<0xFF800000> : vector<1xf32>
    %9 = vector.multi_reduction <maximumf>, %8, %cst_5 [1, 2] : vector<1x8x256xf32> to vector<1xf32>
    %10 = vector.shape_cast %9 : vector<1xf32> to vector<1x1x1xf32>
    %11 = vector.extract %10[0, 0, 0] : f32 from vector<1x1x1xf32>
    %cst_6 = arith.constant 0.000000e+00 : f32
    %12 = arith.maximumf %11, %cst_6 : f32
    %13 = arith.subf %12, %6 : f32
    %cst_7 = arith.constant 0.00392156886 : f32
    %14 = arith.mulf %13, %cst_7 : f32
    %cst_8 = arith.constant 9.99999993E-9 : f32
    %15 = arith.maximumf %14, %cst_8 : f32
    %cst_9 = arith.constant 1.000000e+00 : f32
    %16 = arith.divf %cst_9, %15 : f32
    %17 = arith.mulf %6, %16 : f32
    %cst_10 = arith.constant 0.000000e+00 : f32
    %18 = arith.subf %cst_10, %17 : f32
    %19 = math.roundeven %18 : f32
    %cst_11 = arith.constant 0.000000e+00 : f32
    %cst_12 = arith.constant 2.550000e+02 : f32
    %20 = arith.maximumf %cst_11, %19 : f32
    %21 = arith.minimumf %cst_12, %20 : f32
    %22 = arith.index_cast %arg0 : i32 to index
    %c0_13 = arith.constant 0 : index
    %c0_14 = arith.constant 0 : index
    %23 = vector.load %arg1[%22, %c0_13, %c0_14] : memref<2x8x256xf32, #tpu.memory_space<vmem>>, vector<1x8x256xf32>
    %24 = vector.shape_cast %23 : vector<1x8x256xf32> to vector<8x256xf32>
    %25 = vector.broadcast %16 : f32 to vector<8x256xf32>
    %26 = arith.mulf %24, %25 : vector<8x256xf32>
    %27 = vector.broadcast %21 : f32 to vector<8x256xf32>
    %28 = arith.addf %26, %27 : vector<8x256xf32>
    %29 = math.roundeven %28 : vector<8x256xf32>
    %cst_15 = arith.constant 0.000000e+00 : f32
    %cst_16 = arith.constant 2.550000e+02 : f32
    %30 = vector.broadcast %cst_15 : f32 to vector<8x256xf32>
    %31 = arith.maximumf %30, %29 : vector<8x256xf32>
    %32 = vector.broadcast %cst_16 : f32 to vector<8x256xf32>
    %33 = arith.minimumf %32, %31 : vector<8x256xf32>
    %34 = vector.broadcast %21 : f32 to vector<8x256xf32>
    %35 = arith.subf %33, %34 : vector<8x256xf32>
    %36 = vector.broadcast %15 : f32 to vector<8x256xf32>
    %37 = arith.mulf %35, %36 : vector<8x256xf32>
    %c17_i32 = arith.constant 17 : i32
    %38 = tpu.dynamic_rotate %37 by %c17_i32 dim 1 : vector<8x256xf32>, i32 -> vector<8x256xf32>
    %c16_i32 = arith.constant 16 : i32
    %39 = tpu.dynamic_rotate %37 by %c16_i32 dim 1 : vector<8x256xf32>, i32 -> vector<8x256xf32>
    %c15_i32 = arith.constant 15 : i32
    %40 = tpu.dynamic_rotate %37 by %c15_i32 dim 1 : vector<8x256xf32>, i32 -> vector<8x256xf32>
    %c1_i32 = arith.constant 1 : i32
    %41 = tpu.dynamic_rotate %37 by %c1_i32 dim 1 : vector<8x256xf32>, i32 -> vector<8x256xf32>
    %c255_i32 = arith.constant 255 : i32
    %42 = tpu.dynamic_rotate %37 by %c255_i32 dim 1 : vector<8x256xf32>, i32 -> vector<8x256xf32>
    %c241_i32 = arith.constant 241 : i32
    %43 = tpu.dynamic_rotate %37 by %c241_i32 dim 1 : vector<8x256xf32>, i32 -> vector<8x256xf32>
    %c240_i32 = arith.constant 240 : i32
    %44 = tpu.dynamic_rotate %37 by %c240_i32 dim 1 : vector<8x256xf32>, i32 -> vector<8x256xf32>
    %c239_i32 = arith.constant 239 : i32
    %45 = tpu.dynamic_rotate %37 by %c239_i32 dim 1 : vector<8x256xf32>, i32 -> vector<8x256xf32>
    %46 = tpu.concatenate %38, %39, %40, %41, %37, %42, %43, %44, %45 in 0 : vector<8x256xf32>, vector<8x256xf32>, vector<8x256xf32>, vector<8x256xf32>, vector<8x256xf32>, vector<8x256xf32>, vector<8x256xf32>, vector<8x256xf32>, vector<8x256xf32> -> vector<72x256xf32>
    %c0_17 = arith.constant 0 : index
    %c0_18 = arith.constant 0 : index
    %47 = vector.load %arg3[%c0_17, %c0_18] : memref<72x256xf32, #tpu.memory_space<vmem>>, vector<72x256xf32>
    %48 = arith.mulf %46, %47 : vector<72x256xf32>
    %c0_19 = arith.constant 0 : index
    %c0_20 = arith.constant 0 : index
    %49 = vector.load %arg2[%c0_19, %c0_20] : memref<8x72xf32, #tpu.memory_space<vmem>>, vector<8x72xf32>
    %cst_21 = arith.constant dense<0.000000e+00> : vector<8x256xf32>
    %50 = tpu.matmul %49, %48, %cst_21 {dimension_numbers = #tpu.dot_dimension_numbers<[1], [0], [0], [1], [0, 0, 1, 1], [], []>} : vector<8x72xf32>, vector<72x256xf32>, vector<8x256xf32> -> vector<8x256xf32>
    %c0_22 = arith.constant 0 : index
    %c0_23 = arith.constant 0 : index
    %51 = vector.load %arg4[%c0_22, %c0_23] : memref<8x1xf32, #tpu.memory_space<vmem>>, vector<8x1xf32>
    %52 = vector.broadcast %51 : vector<8x1xf32> to vector<8x256xf32>
    %53 = arith.addf %50, %52 : vector<8x256xf32>
    %cst_24 = arith.constant 0.000000e+00 : f32
    %54 = vector.broadcast %cst_24 : f32 to vector<8x256xf32>
    %55 = arith.maximumf %53, %54 : vector<8x256xf32>
    %c0_25 = arith.constant 0 : index
    %c0_26 = arith.constant 0 : index
    %c0_27 = arith.constant 0 : index
    %56 = vector.load %arg5[%c0_25, %c0_26, %c0_27] : memref<1x8x256xf32, #tpu.memory_space<vmem>>, vector<1x8x256xf32>
    %57 = vector.shape_cast %56 : vector<1x8x256xf32> to vector<8x256xf32>
    %58 = vector.shape_cast %55 : vector<8x256xf32> to vector<1x8x256xf32>
    tpu.vector_store %arg5[%c0_25, %c0_26, %c0_27], %58 {strides = array<i32>} : memref<1x8x256xf32, #tpu.memory_space<vmem>>, vector<1x8x256xf32>,
    return
  }
  func.func @transform_0(%arg0: i32) -> (i32, i32, i32) {
    %c0_i32 = arith.constant 0 : i32
    %c0_i32_0 = arith.constant 0 : i32
    %c0_i32_1 = arith.constant 0 : i32
    %c0_i32_2 = arith.constant 0 : i32
    return %c0_i32, %c0_i32_0, %c0_i32_1 : i32, i32, i32
  }
  func.func @transform_1(%arg0: i32) -> (i32, i32) {
    %c0_i32 = arith.constant 0 : i32
    %c0_i32_0 = arith.constant 0 : i32
    %c0_i32_1 = arith.constant 0 : i32
    return %c0_i32, %c0_i32_0 : i32, i32
  }
  func.func @transform_2(%arg0: i32) -> (i32, i32) {
    %c0_i32 = arith.constant 0 : i32
    %c0_i32_0 = arith.constant 0 : i32
    %c0_i32_1 = arith.constant 0 : i32
    return %c0_i32, %c0_i32_0 : i32, i32
  }
  func.func @transform_3(%arg0: i32) -> (i32, i32) {
    %c0_i32 = arith.constant 0 : i32
    %c0_i32_0 = arith.constant 0 : i32
    %c0_i32_1 = arith.constant 0 : i32
    return %c0_i32, %c0_i32_0 : i32, i32
  }
  func.func @transform_4(%arg0: i32) -> (i32, i32, i32) {
    %c0_i32 = arith.constant 0 : i32
    %c0_i32_0 = arith.constant 0 : i32
    %c0_i32_1 = arith.constant 0 : i32
    return %arg0, %c0_i32, %c0_i32_0 : i32, i32, i32
  }
}

</mosaic_0001>

<llo_original>
// kernel: ptq_wrapper_forward.1
$region0: #{ptq_wrapper_forward.1}
  #allocation0 [shape = 'u32[]', space=smem, size = 0x4, offset = 0x4, fixed_abs, tag = 'smem constant byte address 0x4 - core index']
  #allocation1 [shape = 'u32[144,128]{1,0:T(1,128)}', space=vmem, size = 0x12000, scoped, tag = 'internal scratch']
  %s0 = inlined_call_operand.vmem [shape: f32[2,8,256], index: 0, kind: input, shape index: {}]
  %s1 = inlined_call_operand.vmem [shape: f32[8,72], index: 1, kind: input, shape index: {}]
  %s2 = inlined_call_operand.vmem [shape: f32[72,256], index: 2, kind: input, shape index: {}]
  %s3 = inlined_call_operand.vmem [shape: f32[8,1], index: 3, kind: input, shape index: {}]
  %s4 = inlined_call_operand.vmem [shape: f32[2,8,256], index: 4, kind: output, shape index: {}]
  %s5 = sld [smem:[#allocation0]]
  $region49: #{ptq_wrapper_forward.1} parent=0
    _
  %s7 = ssub.s32 1, %s5
  %s8 = scalar_select 0, %s7, %s5
  loop: start=0, step=1, limit=4
  $region2: #{ptq_wrapper_forward.1} parent=0 // loop_pre_header
    _
  $region3: #{ptq_wrapper_forward.1} parent=0 // loop_header
    %s10 = sphi 0, %s14
    %p11 = scmp.ge.s32.totalorder %s10, 4
    %s18 = sphi 0, %s18
    %s20 = sphi 0, %s18
    %s21 = sphi 0, %s20
    %s35 = sphi 0, %s21
    %s39 = sphi 0, %s39
    %s41 = sphi 0, %s39
    %s42 = sphi 0, %s41
    %s56 = sphi 0, %s42
    %s60 = sphi 0, %s60
    %s62 = sphi 0, %s60
    %s63 = sphi 0, %s62
    %s77 = sphi 0, %s63
    %s81 = sphi 0, %s81
    %s83 = sphi 0, %s81
    %s84 = sphi 0, %s83
    %s98 = sphi 0, %s84
    %s104 = sphi 0, %s106
    %s107 = sphi 0, %s104
    %s108 = sphi 0, %s107
    %s124 = sphi 0, %s108
  $region4: #{ptq_wrapper_forward.1} parent=0 // loop_header_branch
    %13 = sbr.rel (%p11) target = $region8
  $region5: #{ptq_wrapper_forward.1} parent=0 // loop_body
    %s15 = ssub.s32 %s10, 1
    %s16 = ssub.s32 %s10, 2
    %s17 = sadd.s32 %s10, 1
    %s19 = sadd.s32 %s18, 1
    %p22 = scmp.eq.s32.totalorder %s10, 1
    %p23 = scmp.ne.s32.totalorder %s18, %s20
    %p24 = scmp.eq.s32.totalorder %s10, 0
    %p25 = por %p23, %p24
    %p26 = scmp.ne.s32.totalorder %s18, %s20
    %p27 = scmp.eq.s32.totalorder %s15, 1
    %p28 = por %p26, %p27
    %p29 = scmp.ne.s32.totalorder %s20, %s21
    %p30 = scmp.eq.s32.totalorder %s15, 0
    %p31 = por %p29, %p30
    %p32 = scmp.ne.s32.totalorder %s20, %s21
    %p33 = scmp.eq.s32.totalorder %s16, 1
    %p34 = por %p32, %p33
    %p36 = scmp.ne.s32.totalorder %s21, %s35
    %p37 = scmp.eq.s32.totalorder %s16, 0
    %p38 = por %p36, %p37
    %s40 = sadd.s32 %s39, 1
    %p43 = scmp.eq.s32.totalorder %s10, 1
    %p44 = scmp.ne.s32.totalorder %s39, %s41
    %p45 = scmp.eq.s32.totalorder %s10, 0
    %p46 = por %p44, %p45
    %p47 = scmp.ne.s32.totalorder %s39, %s41
    %p48 = scmp.eq.s32.totalorder %s15, 1
    %p49 = por %p47, %p48
    %p50 = scmp.ne.s32.totalorder %s41, %s42
    %p51 = scmp.eq.s32.totalorder %s15, 0
    %p52 = por %p50, %p51
    %p53 = scmp.ne.s32.totalorder %s41, %s42
    %p54 = scmp.eq.s32.totalorder %s16, 1
    %p55 = por %p53, %p54
    %p57 = scmp.ne.s32.totalorder %s42, %s56
    %p58 = scmp.eq.s32.totalorder %s16, 0
    %p59 = por %p57, %p58
    %s61 = sadd.s32 %s60, 1
    %p64 = scmp.eq.s32.totalorder %s10, 1
    %p65 = scmp.ne.s32.totalorder %s60, %s62
    %p66 = scmp.eq.s32.totalorder %s10, 0
    %p67 = por %p65, %p66
    %p68 = scmp.ne.s32.totalorder %s60, %s62
    %p69 = scmp.eq.s32.totalorder %s15, 1
    %p70 = por %p68, %p69
    %p71 = scmp.ne.s32.totalorder %s62, %s63
    %p72 = scmp.eq.s32.totalorder %s15, 0
    %p73 = por %p71, %p72
    %p74 = scmp.ne.s32.totalorder %s62, %s63
    %p75 = scmp.eq.s32.totalorder %s16, 1
    %p76 = por %p74, %p75
    %p78 = scmp.ne.s32.totalorder %s63, %s77
    %p79 = scmp.eq.s32.totalorder %s16, 0
    %p80 = por %p78, %p79
    %s82 = sadd.s32 %s81, 1
    %p85 = scmp.eq.s32.totalorder %s10, 1
    %p86 = scmp.ne.s32.totalorder %s81, %s83
    %p87 = scmp.eq.s32.totalorder %s10, 0
    %p88 = por %p86, %p87
    %p89 = scmp.ne.s32.totalorder %s81, %s83
    %p90 = scmp.eq.s32.totalorder %s15, 1
    %p91 = por %p89, %p90
    %p92 = scmp.ne.s32.totalorder %s83, %s84
    %p93 = scmp.eq.s32.totalorder %s15, 0
    %p94 = por %p92, %p93
    %p95 = scmp.ne.s32.totalorder %s83, %s84
    %p96 = scmp.eq.s32.totalorder %s16, 1
    %p97 = por %p95, %p96
    %p99 = scmp.ne.s32.totalorder %s84, %s98
    %p100 = scmp.eq.s32.totalorder %s16, 0
    %p101 = por %p99, %p100
    %s102 = ssub.s32 %s10, %s17
    %p103 = scmp.eq.s32.totalorder %s102, 0
    %s105 = sadd.s32 %s104, 1
    %s106 = scalar_select %p103, %s104, %s105
    %p109 = pneg %p103
    %p110 = scmp.eq.s32.totalorder %s10, 1
    %p111 = por %p109, %p110
    %p112 = scmp.ne.s32.totalorder %s104, %s107
    %p113 = scmp.eq.s32.totalorder %s10, 0
    %p114 = por %p112, %p113
    %p115 = scmp.ne.s32.totalorder %s104, %s107
    %p116 = scmp.eq.s32.totalorder %s15, 1
    %p117 = por %p115, %p116
    %p118 = scmp.ne.s32.totalorder %s107, %s108
    %p119 = scmp.eq.s32.totalorder %s15, 0
    %p120 = por %p118, %p119
    %p121 = scmp.ne.s32.totalorder %s107, %s108
    %p122 = scmp.eq.s32.totalorder %s16, 1
    %p123 = por %p121, %p122
    %p125 = scmp.ne.s32.totalorder %s108, %s124
    %p126 = scmp.eq.s32.totalorder %s16, 0
    %p127 = por %p125, %p126
    %p128 = scmp.le.s32.totalorder 1, %s10
    %p129 = scmp.lt.s32.totalorder %s10, 3
    %p130 = pnand %p128, %p129
    %p131 = pneg %p130
    // Predicated region
    $region9: #{ptq_wrapper_forward.1} parent=5 // pred_check
      _
    $region10: #{ptq_wrapper_forward.1} parent=5 // pred_check_branch
      %133 = sbr.rel (%p130) target = $region12
    $region11: #{ptq_wrapper_forward.1} parent=5 // pred_region
      %s134 = ssub.s32 %s10, 1
      // Predicated region
      $region13: #{ptq_wrapper_forward.1} parent=11 // pred_check
        %p135 = pneg %p31
      $region14: #{ptq_wrapper_forward.1} parent=11 // pred_check_branch
        %137 = sbr.rel (%p135) target = $region16
      $region15: #{ptq_wrapper_forward.1} parent=11 // pred_region
        _
      $region16: #{ptq_wrapper_forward.1} parent=11 // pred_fallthru
        _
      // Predicated region
      $region17: #{ptq_wrapper_forward.1} parent=11 // pred_check
        %p138 = pneg %p52
      $region18: #{ptq_wrapper_forward.1} parent=11 // pred_check_branch
        %140 = sbr.rel (%p138) target = $region20
      $region19: #{ptq_wrapper_forward.1} parent=11 // pred_region
        _
      $region20: #{ptq_wrapper_forward.1} parent=11 // pred_fallthru
        _
      // Predicated region
      $region21: #{ptq_wrapper_forward.1} parent=11 // pred_check
        %p141 = pneg %p73
      $region22: #{ptq_wrapper_forward.1} parent=11 // pred_check_branch
        %143 = sbr.rel (%p141) target = $region24
      $region23: #{ptq_wrapper_forward.1} parent=11 // pred_region
        _
      $region24: #{ptq_wrapper_forward.1} parent=11 // pred_fallthru
        _
      // Predicated region
      $region25: #{ptq_wrapper_forward.1} parent=11 // pred_check
        %p144 = pneg %p94
      $region26: #{ptq_wrapper_forward.1} parent=11 // pred_check_branch
        %146 = sbr.rel (%p144) target = $region28
      $region27: #{ptq_wrapper_forward.1} parent=11 // pred_region
        _
      $region28: #{ptq_wrapper_forward.1} parent=11 // pred_fallthru
        _
    $region12: #{ptq_wrapper_forward.1} parent=5 // pred_fallthru
      _
    %p147 = scmp.lt.s32.totalorder %s10, 2
    // Predicated region
    $region29: #{ptq_wrapper_forward.1} parent=5 // pred_check
      %p148 = pneg %p147
    $region30: #{ptq_wrapper_forward.1} parent=5 // pred_check_branch
      %150 = sbr.rel (%p148) target = $region32
    $region31: #{ptq_wrapper_forward.1} parent=5 // pred_region
      _
    $region32: #{ptq_wrapper_forward.1} parent=5 // pred_fallthru
      _
    %p151 = scmp.le.s32.totalorder 1, %s10
    %p152 = scmp.lt.s32.totalorder %s10, 3
    %p153 = pnand %p151, %p152
    %p154 = pneg %p153
    // Predicated region
    $region33: #{ptq_wrapper_forward.1} parent=5 // pred_check
      _
    $region34: #{ptq_wrapper_forward.1} parent=5 // pred_check_branch
      %156 = sbr.rel (%p153) target = $region36
    $region35: #{ptq_wrapper_forward.1} parent=5 // pred_region
      %s157 = ssub.s32 %s10, 1
      %p158 = pneg %p31
      %p159 = pneg %p28
      %p160 = pneg %p52
      %p161 = pneg %p49
      %p162 = pneg %p73
      %p163 = pneg %p70
      %p164 = pneg %p94
      %p165 = pneg %p91
      %p166 = pneg %p120
      %p167 = pneg %p117
      %p168 = scmp.lt.s32.totalorder %s15, 1
      %s169 = scalar_select %p168, %s15, 1
      %s170 = smul.addr %s169, 2
      %s171 = smul.addr %s170, 8
      %s172 = scalar_lea.vmem %s4, %s171
      %p173 = scmp.lt.s32.totalorder %s15, 1
      %s174 = scalar_select %p173, %s15, 1
      %s175 = smul.addr %s174, 2
      %s176 = smul.addr %s175, 8
      %s177 = scalar_lea.vmem %s4, %s176
      %v178 = vld [vmem:[%s0] sm:$0xff]
      %v179 = vld [vmem:[%s0 + $0x8] sm:$0xff]
      %v180 = vld [vmem:[%s0 + $0x10] sm:$0xff]
      %v181 = vld [vmem:[%s0 + $0x18] sm:$0xff]
      %v182 = vmin.f32 %v178, %v180
      %v183 = vmin.f32 %v179, %v181
      %v184 = vmin.f32 %v182, %v183
      %185 = vmin.xlane.f32.xlu0 %v184
      %v186 = vpop.xlane.xlu0 %185
      %v187 = vrot.slane %v186, 4
      %v188 = vmin.f32 %v186, %v187
      %v189 = vrot.slane %v188, 2
      %v190 = vmin.f32 %v188, %v189
      %v191 = vrot.slane %v190, 1
      %v192 = vmin.f32 %v190, %v191
      %s193 = vtos %v192
      %s194 = smin.f32 %s193, 0.0
      %v195 = vmax.f32 %v178, %v180
      %v196 = vmax.f32 %v179, %v181
      %v197 = vmax.f32 %v195, %v196
      %198 = vmax.xlane.f32.xlu0 %v197
      %v199 = vpop.xlane.xlu0 %198
      %v200 = vrot.slane %v199, 4
      %v201 = vmax.f32 %v199, %v200
      %v202 = vrot.slane %v201, 2
      %v203 = vmax.f32 %v201, %v202
      %v204 = vrot.slane %v203, 1
      %v205 = vmax.f32 %v203, %v204
      %s206 = vtos %v205
      %s207 = smax.f32 %s206, 0.0
      %s208 = ssub.f32 %s207, %s194
      %s209 = smul.f32 %s208, 0.003921569
      %s210 = smax.f32 %s209, 1e-08
      %v211 = vstv %s210
      %v212 = vrcp.pop %v211
      %s213 = vtos %v212
      %s214 = smul.f32 %s194, %s213
      %s215 = ssub.f32 0.0, %s214
      %s216 = scvt.f32.s32 %s215
      %s217 = scvt.s32.f32 %s216
      %s218 = sand.u32 2147483647, %s217
      %s219 = sand.u32 %s215, 2147483648
      %s220 = sor.u32 %s218, %s219
      %s221 = sand.u32 2147483647, %s215
      %p222 = scmp.lt.f32.partialorder %s221, 2.1474836e+09
      %s223 = scalar_select %p222, %s220, %s215
      %s224 = smax.f32 %s223, 0.0
      %s225 = smin.f32 %s224, 255.0
      %s226 = smul.u32 %s15, 2
      %s227 = smul.addr %s226, 8
      %s228 = scalar_lea.vmem %s0, %s227
      %v229 = vld [vmem:[%s228] sm:$0xff]
      %v230 = vld [vmem:[%s228 + $0x8] sm:$0xff]
      %v231 = vstv %s213
      %v232 = vmul.f32 %v229, %v231
      %v233 = vmul.f32 %v230, %v231
      %v234 = vstv %s225
      %v235 = vadd.f32 %v232, %v234
      %v236 = vadd.f32 %v233, %v234
      %v237 = vround.ne.pseudo %v235
      %v238 = vround.ne.pseudo %v236
      %v239 = vmax.f32 %v237, 0.0
      %v240 = vmax.f32 %v238, 0.0
      %v241 = vmin.f32 %v239, 255.0
      %v242 = vmin.f32 %v240, 255.0
      %v243 = vsub.f32 %v241, %v234
      %v244 = vsub.f32 %v242, %v234
      %v245 = vstv %s210
      %v246 = vmul.f32 %v243, %v245
      %v247 = vmul.f32 %v244, %v245
      %248 = vrot.lane.b32.xlu0 %v246, 17
      %v249 = vpop.permute.xlu0 %248
      %250 = vrot.lane.b32.xlu0 %v247, 17
      %v251 = vpop.permute.xlu0 %250
      %v252 = vlaneseq
      %v253 = vand.u32 %v252, 127
      %vm254 = vcmp.lt.s32.totalorder %v253, 17
      %v255 = vsel %vm254, %v249, %v251
      %v256 = vsel %vm254, %v251, %v249
      %257 = vrot.lane.b32.xlu0 %v246, 16
      %v258 = vpop.permute.xlu0 %257
      %259 = vrot.lane.b32.xlu0 %v247, 16
      %v260 = vpop.permute.xlu0 %259
      %vm261 = vcmp.lt.s32.totalorder %v253, 16
      %v262 = vsel %vm261, %v258, %v260
      %v263 = vsel %vm261, %v260, %v258
      %264 = vrot.lane.b32.xlu0 %v246, 15
      %v265 = vpop.permute.xlu0 %264
      %266 = vrot.lane.b32.xlu0 %v247, 15
      %v267 = vpop.permute.xlu0 %266
      %vm268 = vcmp.lt.s32.totalorder %v253, 15
      %v269 = vsel %vm268, %v265, %v267
      %v270 = vsel %vm268, %v267, %v265
      %271 = vrot.lane.b32.xlu0 %v246, 1
      %v272 = vpop.permute.xlu0 %271
      %273 = vrot.lane.b32.xlu0 %v247, 1
      %v274 = vpop.permute.xlu0 %273
      %vm275 = vcmp.lt.s32.totalorder %v253, 1
      %v276 = vsel %vm275, %v272, %v274
      %v277 = vsel %vm275, %v274, %v272
      %278 = vrot.lane.b32.xlu0 %v246, 127
      %v279 = vpop.permute.xlu0 %278
      %280 = vrot.lane.b32.xlu0 %v247, 127
      %v281 = vpop.permute.xlu0 %280
      %vm282 = vcmp.lt.s32.totalorder %v253, 127
      %v283 = vsel %vm282, %v279, %v281
      %v284 = vsel %vm282, %v281, %v279
      %285 = vrot.lane.b32.xlu0 %v246, 113
      %v286 = vpop.permute.xlu0 %285
      %287 = vrot.lane.b32.xlu0 %v247, 113
      %v288 = vpop.permute.xlu0 %287
      %vm289 = vcmp.lt.s32.totalorder %v253, 113
      %v290 = vsel %vm289, %v286, %v288
      %v291 = vsel %vm289, %v288, %v286
      %292 = vrot.lane.b32.xlu0 %v246, 112
      %v293 = vpop.permute.xlu0 %292
      %294 = vrot.lane.b32.xlu0 %v247, 112
      %v295 = vpop.permute.xlu0 %294
      %vm296 = vcmp.lt.s32.totalorder %v253, 112
      %v297 = vsel %vm296, %v293, %v295
      %v298 = vsel %vm296, %v295, %v293
      %299 = vrot.lane.b32.xlu0 %v246, 111
      %v300 = vpop.permute.xlu0 %299
      %301 = vrot.lane.b32.xlu0 %v247, 111
      %v302 = vpop.permute.xlu0 %301
      %vm303 = vcmp.lt.s32.totalorder %v253, 111
      %v304 = vsel %vm303, %v300, %v302
      %v305 = vsel %vm303, %v302, %v300
      %v306 = vld [vmem:[%s2] sm:$0xff]
      %v307 = vld [vmem:[%s2 + $0x8] sm:$0xff]
      %v308 = vld [vmem:[%s2 + $0x10] sm:$0xff]
      %v309 = vld [vmem:[%s2 + $0x18] sm:$0xff]
      %v310 = vld [vmem:[%s2 + $0x20] sm:$0xff]
      %v311 = vld [vmem:[%s2 + $0x28] sm:$0xff]
      %v312 = vld [vmem:[%s2 + $0x30] sm:$0xff]
      %v313 = vld [vmem:[%s2 + $0x38] sm:$0xff]
      %v314 = vld [vmem:[%s2 + $0x40] sm:$0xff]
      %v315 = vld [vmem:[%s2 + $0x48] sm:$0xff]
      %v316 = vld [vmem:[%s2 + $0x50] sm:$0xff]
      %v317 = vld [vmem:[%s2 + $0x58] sm:$0xff]
      %v318 = vld [vmem:[%s2 + $0x60] sm:$0xff]
      %v319 = vld [vmem:[%s2 + $0x68] sm:$0xff]
      %v320 = vld [vmem:[%s2 + $0x70] sm:$0xff]
      %v321 = vld [vmem:[%s2 + $0x78] sm:$0xff]
      %v322 = vld [vmem:[%s2 + $0x80] sm:$0xff]
      %v323 = vld [vmem:[%s2 + $0x88] sm:$0xff]
      %v324 = vmul.f32 %v256, %v306
      %v325 = vmul.f32 %v255, %v307
      %v326 = vmul.f32 %v263, %v308
      %v327 = vmul.f32 %v262, %v309
      %v328 = vmul.f32 %v270, %v310
      %v329 = vmul.f32 %v269, %v311
      %v330 = vmul.f32 %v277, %v312
      %v331 = vmul.f32 %v276, %v313
      %v332 = vmul.f32 %v246, %v314
      %v333 = vmul.f32 %v247, %v315
      %v334 = vmul.f32 %v283, %v316
      %v335 = vmul.f32 %v284, %v317
      %v336 = vmul.f32 %v290, %v318
      %v337 = vmul.f32 %v291, %v319
      %v338 = vmul.f32 %v297, %v320
      %v339 = vmul.f32 %v298, %v321
      %v340 = vmul.f32 %v304, %v322
      %v341 = vmul.f32 %v305, %v323
      %v342 = vld [vmem:[%s1] sm:$0xff]
      %v343 = vld [vmem:[%s3] sm:$0xff]
      %345 = vset.pattern.permute.xlu0 0
      %346 = vperm.xlu0 %345, %v343
      %v347 = vpop.permute.xlu0 %346
      %vm349 = vcmask 588800
      %v351 = vsel %vm349, %v342, 0
      %353 = vmatprep.subr.mxu0 %v325
      %354 = vmatpush1.msra.mxu0 %v324
      %355 = vmatprep.subr.mxu0 %v327
      %356 = vmatpush1.msra.mxu0 %v326
      %357 = vmatprep.subr.mxu0 %v329
      %358 = vmatpush1.msra.mxu0 %v328
      %359 = vmatprep.subr.mxu0 %v331
      %360 = vmatpush1.msra.mxu0 %v330
      %361 = vmatprep.subr.mxu0 %v333
      %362 = vmatpush1.msra.mxu0 %v332
      %363 = vmatprep.subr.mxu0 %v335
      %364 = vmatpush1.msra.mxu0 %v334
      %365 = vmatprep.subr.mxu0 %v337
      %366 = vmatpush1.msra.mxu0 %v336
      %367 = vmatprep.subr.mxu0 %v339
      %368 = vmatpush1.msra.mxu0 %v338
      %369 = vmatprep.subr.mxu0 %v341
      %370 = vmatpush1.msra.mxu0 %v340
      %371 = vmatprep.subr.mxu0 0.0
      %372 = vmatpush1.msra.mxu0 0.0
      %373 = vmatprep.subr.mxu0 0.0
      %374 = vmatpush1.msra.mxu0 0.0
      %375 = vmatprep.subr.mxu0 0.0
      %376 = vmatpush1.msra.mxu0 0.0
      %377 = vmatprep.subr.mxu0 0.0
      %378 = vmatpush1.msra.mxu0 0.0
      %379 = vmatprep.subr.mxu0 0.0
      %380 = vmatpush1.msra.mxu0 0.0
      %381 = vmatprep.subr.mxu0 0.0
      %382 = vmatpush1.msra.mxu0 0.0
      %383 = vmatprep.subr.mxu0 0.0
      %384 = vmatpush1.msra.mxu0 0.0
      %385 = vmatprep.subr.mxu0 0.0
      %386 = vmatpush1.msra.mxu0 0.0
      %387 = vmatprep.subr.mxu0 0.0
      %388 = vmatpush1.msra.mxu0 0.0
      %389 = vmatprep.subr.mxu0 0.0
      %390 = vmatpush1.msra.mxu0 0.0
      %391 = vmatprep.subr.mxu0 0.0
      %392 = vmatpush1.msra.mxu0 0.0
      %393 = vmatprep.subr.mxu0 0.0
      %394 = vmatpush1.msra.mxu0 0.0
      %395 = vmatprep.subr.mxu0 0.0
      %396 = vmatpush1.msra.mxu0 0.0
      %397 = vmatprep.subr.mxu0 0.0
      %398 = vmatpush1.msra.mxu0 0.0
      %399 = vmatprep.subr.mxu0 0.0
      %400 = vmatpush1.msra.mxu0 0.0
      %401 = vmatprep.subr.mxu0 0.0
      %402 = vmatpush1.msra.mxu0 0.0
      %403 = vmatprep.subr.mxu0 0.0
      %404 = vmatpush1.msra.mxu0 0.0
      %405 = vmatprep.subr.mxu0 0.0
      %406 = vmatpush1.msra.mxu0 0.0
      %407 = vmatprep.subr.mxu0 0.0
      %408 = vmatpush1.msra.mxu0 0.0
      %409 = vmatprep.subr.mxu0 0.0
      %410 = vmatpush1.msra.mxu0 0.0
      %411 = vmatprep.subr.mxu0 0.0
      %412 = vmatpush1.msra.mxu0 0.0
      %413 = vmatprep.subr.mxu0 0.0
      %414 = vmatpush1.msra.mxu0 0.0
      %415 = vmatprep.subr.mxu0 0.0
      %416 = vmatpush1.msra.mxu0 0.0
      %417 = vmatprep.mubr.f32.mxu0 0.0
      %418 = vmatmul.mubr.f32.gmra.mrb[0].mxu0 %v351
      %v419 = vpop.f32.mrb[0].mxu0
      %v420 = vadd.f32 %v347, %v419
      %v421 = vpop.f32.mrb[0].mxu0
      %v422 = vadd.f32 %v347, %v421
      %423 = vdwg.mxu0
      %v424 = vmax.f32 %v420, 0.0
      %v425 = vmax.f32 %v422, 0.0
      %426 = vst [vmem:[%s177] sm:$0xff] %v424
      %427 = vst [vmem:[%s177 + $0x8] sm:$0xff] %v425
      %p428 = scmp.lt.s32.totalorder %s15, 1
      %s429 = scalar_select %p428, %s15, 1
      %s430 = smul.addr %s429, 2
      %s431 = smul.addr %s430, 8
      %s432 = scalar_lea.vmem %s4, %s431
      // Predicated region
      $region37: #{ptq_wrapper_forward.1} parent=35 // pred_check
        %p433 = pneg %p117
      $region38: #{ptq_wrapper_forward.1} parent=35 // pred_check_branch
        %435 = sbr.rel (%p433) target = $region40
      $region39: #{ptq_wrapper_forward.1} parent=35 // pred_region
        _
      $region40: #{ptq_wrapper_forward.1} parent=35 // pred_fallthru
        _
    $region36: #{ptq_wrapper_forward.1} parent=5 // pred_fallthru
      _
    %p436 = scmp.le.s32.totalorder 2, %s10
    // Predicated region
    $region41: #{ptq_wrapper_forward.1} parent=5 // pred_check
      %p437 = pneg %p436
    $region42: #{ptq_wrapper_forward.1} parent=5 // pred_check_branch
      %439 = sbr.rel (%p437) target = $region44
    $region43: #{ptq_wrapper_forward.1} parent=5 // pred_region
      %s440 = ssub.s32 %s10, 2
      // Predicated region
      $region45: #{ptq_wrapper_forward.1} parent=43 // pred_check
        %p441 = pneg %p123
      $region46: #{ptq_wrapper_forward.1} parent=43 // pred_check_branch
        %443 = sbr.rel (%p441) target = $region48
      $region47: #{ptq_wrapper_forward.1} parent=43 // pred_region
        %p444 = scmp.lt.s32.totalorder %s16, 1
        %s445 = scalar_select %p444, %s16, 1
        %s446 = smul.addr %s445, 2
        %s447 = smul.addr %s446, 8
        %s448 = scalar_lea.vmem %s4, %s447
      $region48: #{ptq_wrapper_forward.1} parent=43 // pred_fallthru
        _
    $region44: #{ptq_wrapper_forward.1} parent=5 // pred_fallthru
      _
  $region6: #{ptq_wrapper_forward.1} parent=0 // loop_footer
    %s14 = sadd.s32 1, %s10
  $region7: #{ptq_wrapper_forward.1} parent=0 // loop_footer_branch
    %9 = sbr.rel target = $region3
  $region8: #{ptq_wrapper_forward.1} parent=0 // loop_exit
    _

</llo_original>
